<compile_context>
chip_gen: v7x
topology: tpu7x:2x2x1
jax: 0.10.0
libtpu: 0.0.40
codegen_flags: <defaults>
</compile_context>

<pallas_src>
import numpy as np
import jax
import jax.numpy as jnp
from jax.experimental import pallas as pl
from jax.experimental.pallas import tpu as pltpu


def _round_up(x, m):
    return ((x + m - 1) // m) * m


def _make_contrib_kernel(n_parts, want_hidden, want_contrib, precision):
    """out[TB, V*R] = sum_p x_p[TB, K_p] @ W_p[K_p, V*R]  (+ hidden activation)."""

    def kernel(*refs):
        x_refs = refs[:n_parts]
        w_refs = refs[n_parts:2 * n_parts]
        out_refs = refs[2 * n_parts:]
        acc = jnp.dot(x_refs[0][...], w_refs[0][...],
                      preferred_element_type=jnp.float32, precision=precision)
        for p in range(1, n_parts):
            acc = acc + jnp.dot(x_refs[p][...], w_refs[p][...],
                                preferred_element_type=jnp.float32,
                                precision=precision)
        oi = 0
        if want_hidden:
            # 1 - relu(1 - h) + 0.1**5  ==  min(h, 1) + 0.1**5
            out_refs[oi][...] = (jnp.minimum(acc, 1.0) + 0.1 ** 5).astype(out_refs[oi].dtype)
            oi += 1
        if want_contrib:
            out_refs[oi][...] = acc.astype(out_refs[oi].dtype)

    return kernel


def rule_layer_for_concepts(x_continuous, x_categorical_list,
                            attention_continuous, attention_categorical,
                            category_levels, *,
                            block_b=2048, min_grid_steps=2,
                            out_dtype=jnp.float32,
                            want_hidden=True, want_contrib=True,
                            precision=None):
    """Pallas TPU forward of RuleLayer_for_concepts.

    Returns (out, attention_masks_continuous, attention_masks_categorical,
             hidden, variable_contrib) matching the PyTorch module ('out' is an
             empty list there too).  hidden / variable_contrib are None if the
             corresponding want_* flag is False.
    """
    if not (want_hidden or want_contrib):
        raise ValueError("At least one of want_hidden / want_contrib must be True.")

    levels = tuple(int(l) for l in category_levels)
    B, Vc, C = (int(s) for s in x_continuous.shape)
    n_cat = len(levels)
    L = int(sum(levels))
    if Vc > 0:
        R = int(np.shape(attention_continuous)[-1])
    else:
        R = int(np.shape(attention_categorical)[-1])
    V = Vc + n_cat
    VcC = Vc * C
    VR = V * R

    # ---- batch-invariant prep: a few KB -> plain XLA fusion, no extra kernel launch
    amask_cont = (jnp.tanh(jnp.asarray(attention_continuous, jnp.float32)) + 1.0) * 0.5  # (Vc,C,R)
    amask_cat = (jnp.tanh(jnp.asarray(attention_categorical, jnp.float32)) + 1.0) * 0.5  # (L,R)

    x_parts, w_parts, k_dims = [], [], []
    if Vc > 0:
        # block-diagonal continuous weight: W[(v,c), (u,r)] = amask[v,c,r] * (v == u)
        eye_v = jnp.eye(Vc, V, dtype=jnp.float32)                                   # (Vc,V)
        w_cont = jnp.einsum('vcr,vu->vcur', amask_cont, eye_v).reshape(VcC, VR)
        x_parts.append(jnp.asarray(x_continuous, jnp.float32).reshape(B, VcC))      # free reshape
        w_parts.append(w_cont)
        k_dims.append(VcC)
    if n_cat > 0:
        # packed categorical inputs (B, L) and weight placing each variable's
        # (lev_j, R) mask block into columns (Vc+j)*R : (Vc+j+1)*R
        x_parts.append(jnp.concatenate(
            [jnp.asarray(x, jnp.float32) for x in x_categorical_list], axis=1))     # (B, L)
        rows, off = [], 0
        for j, lev in enumerate(levels):
            left = (Vc + j) * R
            rows.append(jnp.pad(amask_cat[off:off + lev], ((0, 0), (left, VR - left - R))))
            off += lev
        w_parts.append(jnp.concatenate(rows, axis=0))                               # (L, V*R)
        k_dims.append(L)
    if not x_parts:
        raise ValueError("RuleLayer_for_concepts: no continuous or categorical variables.")
    n_parts = len(x_parts)
    n_out = int(want_hidden) + int(want_contrib)

    # ---- batch tile size: big tiles to amortize per-step overhead, clamped to a
    # conservative VMEM budget (fits every generation's default scoped limit),
    # and capped so the grid has >= min_grid_steps steps (v7x: 2 TensorCores).
    out_bytes = np.dtype(out_dtype).itemsize
    bytes_per_row = 2 * (4 * sum(k_dims) + out_bytes * n_out * VR)   # double-buffered in/out
    vmem_budget = 12 * 1024 * 1024
    tb_vmem = max(8, (vmem_budget // max(bytes_per_row, 1)) // 8 * 8)
    block_b = max(8, (int(block_b) // 8) * 8)
    min_grid_steps = max(1, int(min_grid_steps))
    tb_steps = _round_up(pl.cdiv(B, min_grid_steps), 8)
    TB = max(8, min(block_b, tb_steps, tb_vmem))
    grid = (pl.cdiv(B, TB),)

    in_specs = ([pl.BlockSpec((TB, k), lambda i: (i, 0)) for k in k_dims] +
                [pl.BlockSpec((k, VR), lambda i: (0, 0)) for k in k_dims])  # weights: constant block, fetched once
    out_specs = tuple(pl.BlockSpec((TB, VR), lambda i: (i, 0)) for _ in range(n_out))
    out_shape = tuple(jax.ShapeDtypeStruct((B, VR), out_dtype) for _ in range(n_out))

    results = pl.pallas_call(
        _make_contrib_kernel(n_parts, want_hidden, want_contrib, precision),
        out_shape=out_shape,
        grid=grid,
        in_specs=in_specs,
        out_specs=out_specs,
        compiler_params=pltpu.CompilerParams(
            dimension_semantics=("parallel",)),   # shard batch tiles across TensorCores (v7x)
    )(*x_parts, *w_parts)

    results = list(results)
    hidden = contrib = None
    if want_hidden:
        hidden = results.pop(0).reshape(B, V, R)    # free row-major reshape
    if want_contrib:
        contrib = results.pop(0).reshape(B, V, R)

    out = []  # matches PyTorch forward: 'out' list is declared but never filled
    return out, amask_cont, amask_cat, hidden, contrib


def _reference_np(x_continuous, x_categorical_list, att_cont, att_cat, levels):
    """Pure-numpy (float64) reference mirroring the PyTorch forward."""
    xc = np.asarray(x_continuous, np.float64)
    amc = (np.tanh(np.asarray(att_cont, np.float64)) + 1.0) / 2.0
    amk = (np.tanh(np.asarray(att_cat, np.float64)) + 1.0) / 2.0
    parts = []
    if xc.shape[1] > 0:
        parts.append(np.einsum('bvc,vcr->bvr', xc, amc))
    cols, off = [], 0
    for j, lev in enumerate(levels):
        m = amk[off:off + lev, :]
        xj = np.asarray(x_categorical_list[j], np.float64)
        cols.append(xj @ m)
        off += lev
    if cols:
        parts.append(np.stack(cols, axis=1))
    contrib = np.concatenate(parts, axis=1)
    hidden = 1.0 - np.maximum(1.0 - contrib, 0.0) + 0.1 ** 5
    return amc, amk, hidden, contrib


if __name__ == "__main__":
    # small config consistent with the module
    n_concepts = 3
    n_rules = 8
    category_info = np.array([0, 0, 0, 0, 2, 3])           # 4 continuous, 2 categorical (levels 2, 3)
    category_levels = [int(l) for l in category_info[category_info > 0]]
    n_cont = int(np.sum(category_info == 0))
    batch = 20                                              # NOT a multiple of 8 -> exercises ragged last block

    key = jax.random.PRNGKey(0)
    k1, k2, k3, k4, k5 = jax.random.split(key, 5)
    attention_continuous = jax.random.uniform(
        k1, (n_cont, n_concepts, n_rules), jnp.float32, minval=-1.0, maxval=0.0)
    attention_categorical = jax.random.uniform(
        k2, (int(sum(category_levels)), n_rules), jnp.float32, minval=-1.0, maxval=0.0)
    x_continuous = jax.random.uniform(k3, (batch, n_cont, n_concepts), jnp.float32)
    x_categorical_list = [
        jax.nn.one_hot(jax.random.randint(k4, (batch,), 0, 2), 2, dtype=jnp.float32),
        jax.nn.one_hot(jax.random.randint(k5, (batch,), 0, 3), 3, dtype=jnp.float32),
    ]

    ref_amc, ref_amk, ref_hidden, ref_contrib = _reference_np(
        x_continuous, x_categorical_list,
        attention_continuous, attention_categorical, category_levels)

    # 1) fp32-exact MXU contraction -> tight tolerance
    out, amc, amk, hidden, contrib = rule_layer_for_concepts(
        x_continuous, x_categorical_list,
        attention_continuous, attention_categorical, category_levels,
        precision=jax.lax.Precision.HIGHEST)
    jax.block_until_ready((amc, amk, hidden, contrib))
    np.testing.assert_allclose(np.asarray(amc), ref_amc, rtol=1e-4, atol=1e-5)
    np.testing.assert_allclose(np.asarray(amk), ref_amk, rtol=1e-4, atol=1e-5)
    np.testing.assert_allclose(np.asarray(contrib), ref_contrib, rtol=1e-4, atol=1e-5)
    np.testing.assert_allclose(np.asarray(hidden), ref_hidden, rtol=1e-4, atol=1e-5)

    # 2) fast default precision (single bf16 MXU pass) -> loose tolerance
    _, _, _, hidden_f, contrib_f = rule_layer_for_concepts(
        x_continuous, x_categorical_list,
        attention_continuous, attention_categorical, category_levels)
    jax.block_until_ready((hidden_f, contrib_f))
    np.testing.assert_allclose(np.asarray(contrib_f), ref_contrib, rtol=2e-2, atol=2e-2)
    np.testing.assert_allclose(np.asarray(hidden_f), ref_hidden, rtol=2e-2, atol=2e-2)

    # 3) no-categorical-variables path (previously a TODO), odd batch size
    x_cont_only = jax.random.uniform(jax.random.PRNGKey(1), (5, n_cont, n_concepts), jnp.float32)
    att_cat_empty = jnp.zeros((0, n_rules), jnp.float32)
    ref2 = _reference_np(x_cont_only, [], attention_continuous, att_cat_empty, [])
    _, _, _, hidden2, contrib2 = rule_layer_for_concepts(
        x_cont_only, [], attention_continuous, att_cat_empty, [],
        precision=jax.lax.Precision.HIGHEST)
    jax.block_until_ready((hidden2, contrib2))
    np.testing.assert_allclose(np.asarray(contrib2), ref2[3], rtol=1e-4, atol=1e-5)
    np.testing.assert_allclose(np.asarray(hidden2), ref2[2], rtol=1e-4, atol=1e-5)

    print("KERNEL_OK")
</pallas_src>

<mosaic_0001>
module attributes {stable_mosaic.version = 11 : i64} {
  func.func @kernel(%arg0: i32, %arg1: memref<16x12xf32, #tpu.memory_space<vmem>>, %arg2: memref<16x5xf32, #tpu.memory_space<vmem>>, %arg3: memref<12x48xf32, #tpu.memory_space<vmem>>, %arg4: memref<5x48xf32, #tpu.memory_space<vmem>>, %arg5: memref<16x48xf32, #tpu.memory_space<vmem>>, %arg6: memref<16x48xf32, #tpu.memory_space<vmem>>) attributes {dimension_semantics = [#tpu.dimension_semantics<parallel>], iteration_bounds = array<i64: 2>, scalar_prefetch = 0 : i64, scratch_operands = 0 : i64, tpu.core_type = #tpu.core_type<tc>, window_params = [{transform_indices = @transform_0, window_bounds = array<i64: 16, 12>}, {transform_indices = @transform_1, window_bounds = array<i64: 16, 5>}, {pipeline_mode = #tpu.pipeline_mode<synchronous>, transform_indices = @transform_2, window_bounds = array<i64: 12, 48>}, {pipeline_mode = #tpu.pipeline_mode<synchronous>, transform_indices = @transform_3, window_bounds = array<i64: 5, 48>}, {transform_indices = @transform_4, window_bounds = array<i64: 16, 48>}, {transform_indices = @transform_5, window_bounds = array<i64: 16, 48>}]} {
    %c0 = arith.constant 0 : index
    %c0_0 = arith.constant 0 : index
    %0 = vector.load %arg1[%c0, %c0_0] : memref<16x12xf32, #tpu.memory_space<vmem>>, vector<16x12xf32>
    %c0_1 = arith.constant 0 : index
    %c0_2 = arith.constant 0 : index
    %1 = vector.load %arg3[%c0_1, %c0_2] : memref<12x48xf32, #tpu.memory_space<vmem>>, vector<12x48xf32>
    %cst = arith.constant dense<0.000000e+00> : vector<16x48xf32>
    %2 = tpu.matmul %0, %1, %cst {dimension_numbers = #tpu.dot_dimension_numbers<[1], [0], [0], [1], [0, 0, 1, 1], [], []>, precision = #tpu.contract_precision<fp32>} : vector<16x12xf32>, vector<12x48xf32>, vector<16x48xf32> -> vector<16x48xf32>
    %c0_3 = arith.constant 0 : index
    %c0_4 = arith.constant 0 : index
    %3 = vector.load %arg2[%c0_3, %c0_4] : memref<16x5xf32, #tpu.memory_space<vmem>>, vector<16x5xf32>
    %c0_5 = arith.constant 0 : index
    %c0_6 = arith.constant 0 : index
    %4 = vector.load %arg4[%c0_5, %c0_6] : memref<5x48xf32, #tpu.memory_space<vmem>>, vector<5x48xf32>
    %cst_7 = arith.constant dense<0.000000e+00> : vector<16x48xf32>
    %5 = tpu.matmul %3, %4, %cst_7 {dimension_numbers = #tpu.dot_dimension_numbers<[1], [0], [0], [1], [0, 0, 1, 1], [], []>, precision = #tpu.contract_precision<fp32>} : vector<16x5xf32>, vector<5x48xf32>, vector<16x48xf32> -> vector<16x48xf32>
    %6 = arith.addf %2, %5 : vector<16x48xf32>
    %cst_8 = arith.constant 1.000000e+00 : f32
    %7 = vector.broadcast %cst_8 : f32 to vector<16x48xf32>
    %8 = arith.minimumf %6, %7 : vector<16x48xf32>
    %cst_9 = arith.constant 9.99999974E-6 : f32
    %9 = vector.broadcast %cst_9 : f32 to vector<16x48xf32>
    %10 = arith.addf %8, %9 : vector<16x48xf32>
    %c0_10 = arith.constant 0 : index
    %c0_11 = arith.constant 0 : index
    %11 = vector.load %arg5[%c0_10, %c0_11] : memref<16x48xf32, #tpu.memory_space<vmem>>, vector<16x48xf32>
    tpu.vector_store %arg5[%c0_10, %c0_11], %10 {strides = array<i32>} : memref<16x48xf32, #tpu.memory_space<vmem>>, vector<16x48xf32>,
    %c0_12 = arith.constant 0 : index
    %c0_13 = arith.constant 0 : index
    %12 = vector.load %arg6[%c0_12, %c0_13] : memref<16x48xf32, #tpu.memory_space<vmem>>, vector<16x48xf32>
    tpu.vector_store %arg6[%c0_12, %c0_13], %6 {strides = array<i32>} : memref<16x48xf32, #tpu.memory_space<vmem>>, vector<16x48xf32>,
    return
  }
  func.func @transform_0(%arg0: i32) -> (i32, i32) {
    %c0_i32 = arith.constant 0 : i32
    %c0_i32_0 = arith.constant 0 : i32
    return %arg0, %c0_i32 : i32, i32
  }
  func.func @transform_1(%arg0: i32) -> (i32, i32) {
    %c0_i32 = arith.constant 0 : i32
    %c0_i32_0 = arith.constant 0 : i32
    return %arg0, %c0_i32 : i32, i32
  }
  func.func @transform_2(%arg0: i32) -> (i32, i32) {
    %c0_i32 = arith.constant 0 : i32
    %c0_i32_0 = arith.constant 0 : i32
    %c0_i32_1 = arith.constant 0 : i32
    return %c0_i32, %c0_i32_0 : i32, i32
  }
  func.func @transform_3(%arg0: i32) -> (i32, i32) {
    %c0_i32 = arith.constant 0 : i32
    %c0_i32_0 = arith.constant 0 : i32
    %c0_i32_1 = arith.constant 0 : i32
    return %c0_i32, %c0_i32_0 : i32, i32
  }
  func.func @transform_4(%arg0: i32) -> (i32, i32) {
    %c0_i32 = arith.constant 0 : i32
    %c0_i32_0 = arith.constant 0 : i32
    return %arg0, %c0_i32 : i32, i32
  }
  func.func @transform_5(%arg0: i32) -> (i32, i32) {
    %c0_i32 = arith.constant 0 : i32
    %c0_i32_0 = arith.constant 0 : i32
    return %arg0, %c0_i32 : i32, i32
  }
}

</mosaic_0001>

<llo_original>
// kernel: tpu_custom_call.1
$region0: #{tpu_custom_call.1}
  #allocation0 [shape = 'u32[]', space=smem, size = 0x4, offset = 0x4, fixed_abs, tag = 'smem constant byte address 0x4 - core index']
  #allocation1 [shape = 'u32[144,128]{1,0:T(1,128)}', space=vmem, size = 0x12000, scoped, tag = 'internal scratch']
  %s0 = inlined_call_operand.vmem [shape: f32[20,12], index: 0, kind: input, shape index: {}]
  %s1 = inlined_call_operand.vmem [shape: f32[20,5], index: 1, kind: input, shape index: {}]
  %s2 = inlined_call_operand.vmem [shape: f32[12,48], index: 2, kind: input, shape index: {}]
  %s3 = inlined_call_operand.vmem [shape: f32[5,48], index: 3, kind: input, shape index: {}]
  %s4 = inlined_call_operand.hbm [shape: f32[20,48], index: 4, kind: output, shape index: {0}]
  %s5 = inlined_call_operand.hbm [shape: f32[20,48], index: 5, kind: output, shape index: {1}]
  %6 = xla_tuple %s4, %s5
  %s7 = sld [smem:[#allocation0]]
  $region57: #{tpu_custom_call.1} parent=0
    _
  %s9 = ssub.s32 1, %s7
  %s10 = scalar_select 0, %s9, %s7
  $region1: #{tpu_custom_call.1} parent=0
    #allocation2 [shape = 'u8[16384]{0}', space=vmem, size = 0x4000, scoped, tag = 'output window, operand 0']
    #allocation3 [shape = 's32[2]{0}', space=sflag, size = 0x8, scoped, tag = 'scoped memory for tpu_custom_call.1']
    #allocation4 [shape = 'u8[16384]{0}', space=vmem, size = 0x4000, scoped, tag = 'output window, operand 1']
    #allocation5 [shape = 's32[2]{0}', space=sflag, size = 0x8, scoped, tag = 'scoped memory for tpu_custom_call.1']
    %11 = vsyncpa [#allocation3], 0
    %s12 = scalar_lea.sflag [#allocation3], 1
    %13 = vsyncpa %s12, 0
    %14 = vsyncpa [#allocation5], 0
    %s15 = scalar_lea.sflag [#allocation5], 1
    %16 = vsyncpa %s15, 0
    loop: start=0, step=1, limit=4
    $region2: #{tpu_custom_call.1} parent=1 // loop_pre_header
      _
    $region3: #{tpu_custom_call.1} parent=1 // loop_header
      %s18 = sphi 0, %s22
      %p19 = scmp.ge.s32.totalorder %s18, 4
      %s28 = sphi 0, %s30
      %s31 = sphi 0, %s28
      %s32 = sphi 0, %s31
      %s48 = sphi 0, %s32
      %s54 = sphi 0, %s56
      %s57 = sphi 0, %s54
      %s58 = sphi 0, %s57
      %s74 = sphi 0, %s58
      %s78 = sphi 0, %s78
      %s80 = sphi 0, %s78
      %s81 = sphi 0, %s80
      %s95 = sphi 0, %s81
      %s99 = sphi 0, %s99
      %s101 = sphi 0, %s99
      %s102 = sphi 0, %s101
      %s116 = sphi 0, %s102
      %s122 = sphi 0, %s124
      %s125 = sphi 0, %s122
      %s126 = sphi 0, %s125
      %s142 = sphi 0, %s126
      %s148 = sphi 0, %s150
      %s151 = sphi 0, %s148
      %s152 = sphi 0, %s151
      %s168 = sphi 0, %s152
    $region4: #{tpu_custom_call.1} parent=1 // loop_header_branch
      %21 = sbr.rel (%p19) target = $region8
    $region5: #{tpu_custom_call.1} parent=1 // loop_body
      %s23 = ssub.s32 %s18, 1
      %s24 = ssub.s32 %s18, 2
      %s25 = sadd.s32 %s18, 1
      %s26 = ssub.s32 %s18, %s25
      %p27 = scmp.eq.s32.totalorder %s26, 0
      %s29 = sadd.s32 %s28, 1
      %s30 = scalar_select %p27, %s28, %s29
      %p33 = pneg %p27
      %p34 = scmp.eq.s32.totalorder %s18, 1
      %p35 = por %p33, %p34
      %p36 = scmp.ne.s32.totalorder %s28, %s31
      %p37 = scmp.eq.s32.totalorder %s18, 0
      %p38 = por %p36, %p37
      %p39 = scmp.ne.s32.totalorder %s28, %s31
      %p40 = scmp.eq.s32.totalorder %s23, 1
      %p41 = por %p39, %p40
      %p42 = scmp.ne.s32.totalorder %s31, %s32
      %p43 = scmp.eq.s32.totalorder %s23, 0
      %p44 = por %p42, %p43
      %p45 = scmp.ne.s32.totalorder %s31, %s32
      %p46 = scmp.eq.s32.totalorder %s24, 1
      %p47 = por %p45, %p46
      %p49 = scmp.ne.s32.totalorder %s32, %s48
      %p50 = scmp.eq.s32.totalorder %s24, 0
      %p51 = por %p49, %p50
      %s52 = ssub.s32 %s18, %s25
      %p53 = scmp.eq.s32.totalorder %s52, 0
      %s55 = sadd.s32 %s54, 1
      %s56 = scalar_select %p53, %s54, %s55
      %p59 = pneg %p53
      %p60 = scmp.eq.s32.totalorder %s18, 1
      %p61 = por %p59, %p60
      %p62 = scmp.ne.s32.totalorder %s54, %s57
      %p63 = scmp.eq.s32.totalorder %s18, 0
      %p64 = por %p62, %p63
      %p65 = scmp.ne.s32.totalorder %s54, %s57
      %p66 = scmp.eq.s32.totalorder %s23, 1
      %p67 = por %p65, %p66
      %p68 = scmp.ne.s32.totalorder %s57, %s58
      %p69 = scmp.eq.s32.totalorder %s23, 0
      %p70 = por %p68, %p69
      %p71 = scmp.ne.s32.totalorder %s57, %s58
      %p72 = scmp.eq.s32.totalorder %s24, 1
      %p73 = por %p71, %p72
      %p75 = scmp.ne.s32.totalorder %s58, %s74
      %p76 = scmp.eq.s32.totalorder %s24, 0
      %p77 = por %p75, %p76
      %s79 = sadd.s32 %s78, 1
      %p82 = scmp.eq.s32.totalorder %s18, 1
      %p83 = scmp.ne.s32.totalorder %s78, %s80
      %p84 = scmp.eq.s32.totalorder %s18, 0
      %p85 = por %p83, %p84
      %p86 = scmp.ne.s32.totalorder %s78, %s80
      %p87 = scmp.eq.s32.totalorder %s23, 1
      %p88 = por %p86, %p87
      %p89 = scmp.ne.s32.totalorder %s80, %s81
      %p90 = scmp.eq.s32.totalorder %s23, 0
      %p91 = por %p89, %p90
      %p92 = scmp.ne.s32.totalorder %s80, %s81
      %p93 = scmp.eq.s32.totalorder %s24, 1
      %p94 = por %p92, %p93
      %p96 = scmp.ne.s32.totalorder %s81, %s95
      %p97 = scmp.eq.s32.totalorder %s24, 0
      %p98 = por %p96, %p97
      %s100 = sadd.s32 %s99, 1
      %p103 = scmp.eq.s32.totalorder %s18, 1
      %p104 = scmp.ne.s32.totalorder %s99, %s101
      %p105 = scmp.eq.s32.totalorder %s18, 0
      %p106 = por %p104, %p105
      %p107 = scmp.ne.s32.totalorder %s99, %s101
      %p108 = scmp.eq.s32.totalorder %s23, 1
      %p109 = por %p107, %p108
      %p110 = scmp.ne.s32.totalorder %s101, %s102
      %p111 = scmp.eq.s32.totalorder %s23, 0
      %p112 = por %p110, %p111
      %p113 = scmp.ne.s32.totalorder %s101, %s102
      %p114 = scmp.eq.s32.totalorder %s24, 1
      %p115 = por %p113, %p114
      %p117 = scmp.ne.s32.totalorder %s102, %s116
      %p118 = scmp.eq.s32.totalorder %s24, 0
      %p119 = por %p117, %p118
      %s120 = ssub.s32 %s18, %s25
      %p121 = scmp.eq.s32.totalorder %s120, 0
      %s123 = sadd.s32 %s122, 1
      %s124 = scalar_select %p121, %s122, %s123
      %p127 = pneg %p121
      %p128 = scmp.eq.s32.totalorder %s18, 1
      %p129 = por %p127, %p128
      %p130 = scmp.ne.s32.totalorder %s122, %s125
      %p131 = scmp.eq.s32.totalorder %s18, 0
      %p132 = por %p130, %p131
      %p133 = scmp.ne.s32.totalorder %s122, %s125
      %p134 = scmp.eq.s32.totalorder %s23, 1
      %p135 = por %p133, %p134
      %p136 = scmp.ne.s32.totalorder %s125, %s126
      %p137 = scmp.eq.s32.totalorder %s23, 0
      %p138 = por %p136, %p137
      %p139 = scmp.ne.s32.totalorder %s125, %s126
      %p140 = scmp.eq.s32.totalorder %s24, 1
      %p141 = por %p139, %p140
      %p143 = scmp.ne.s32.totalorder %s126, %s142
      %p144 = scmp.eq.s32.totalorder %s24, 0
      %p145 = por %p143, %p144
      %s146 = ssub.s32 %s18, %s25
      %p147 = scmp.eq.s32.totalorder %s146, 0
      %s149 = sadd.s32 %s148, 1
      %s150 = scalar_select %p147, %s148, %s149
      %p153 = pneg %p147
      %p154 = scmp.eq.s32.totalorder %s18, 1
      %p155 = por %p153, %p154
      %p156 = scmp.ne.s32.totalorder %s148, %s151
      %p157 = scmp.eq.s32.totalorder %s18, 0
      %p158 = por %p156, %p157
      %p159 = scmp.ne.s32.totalorder %s148, %s151
      %p160 = scmp.eq.s32.totalorder %s23, 1
      %p161 = por %p159, %p160
      %p162 = scmp.ne.s32.totalorder %s151, %s152
      %p163 = scmp.eq.s32.totalorder %s23, 0
      %p164 = por %p162, %p163
      %p165 = scmp.ne.s32.totalorder %s151, %s152
      %p166 = scmp.eq.s32.totalorder %s24, 1
      %p167 = por %p165, %p166
      %p169 = scmp.ne.s32.totalorder %s152, %s168
      %p170 = scmp.eq.s32.totalorder %s24, 0
      %p171 = por %p169, %p170
      %p172 = scmp.le.s32.totalorder 1, %s18
      %p173 = scmp.lt.s32.totalorder %s18, 3
      %p174 = pnand %p172, %p173
      %p175 = pneg %p174
      // Predicated region
      $region9: #{tpu_custom_call.1} parent=5 // pred_check
        _
      $region10: #{tpu_custom_call.1} parent=5 // pred_check_branch
        %177 = sbr.rel (%p174) target = $region12
      $region11: #{tpu_custom_call.1} parent=5 // pred_region
        %s178 = ssub.s32 %s18, 1
        // Predicated region
        $region13: #{tpu_custom_call.1} parent=11 // pred_check
          %p179 = pneg %p91
        $region14: #{tpu_custom_call.1} parent=11 // pred_check_branch
          %181 = sbr.rel (%p179) target = $region16
        $region15: #{tpu_custom_call.1} parent=11 // pred_region
          _
        $region16: #{tpu_custom_call.1} parent=11 // pred_fallthru
          _
        // Predicated region
        $region17: #{tpu_custom_call.1} parent=11 // pred_check
          %p182 = pneg %p112
        $region18: #{tpu_custom_call.1} parent=11 // pred_check_branch
          %184 = sbr.rel (%p182) target = $region20
        $region19: #{tpu_custom_call.1} parent=11 // pred_region
          _
        $region20: #{tpu_custom_call.1} parent=11 // pred_fallthru
          _
      $region12: #{tpu_custom_call.1} parent=5 // pred_fallthru
        _
      %p185 = scmp.lt.s32.totalorder %s18, 2
      // Predicated region
      $region21: #{tpu_custom_call.1} parent=5 // pred_check
        %p186 = pneg %p185
      $region22: #{tpu_custom_call.1} parent=5 // pred_check_branch
        %188 = sbr.rel (%p186) target = $region24
      $region23: #{tpu_custom_call.1} parent=5 // pred_region
        // Predicated region
        $region25: #{tpu_custom_call.1} parent=23 // pred_check
          %p189 = pneg %p38
        $region26: #{tpu_custom_call.1} parent=23 // pred_check_branch
          %191 = sbr.rel (%p189) target = $region28
        $region27: #{tpu_custom_call.1} parent=23 // pred_region
          %s192 = smul.u32 2, %s18
          %s193 = ssub.s32 3, %s192
          %p194 = scmp.lt.s32.totalorder %s193, 2
          %s195 = scalar_select %p194, %s193, 2
          %s196 = smul.u32 128, %s195
          %p197 = scmp.lt.s32.totalorder %s192, 2
          %s198 = scalar_select %p197, %s192, 2
          %s199 = smul.addr %s198, 8
          %s200 = scalar_lea.vmem %s0, %s199
          %s201 = smul.u32 2, %s18
          %s202 = ssub.s32 3, %s201
          %p203 = scmp.lt.s32.totalorder %s202, 2
          %s204 = scalar_select %p203, %s202, 2
          %s205 = smul.u32 128, %s204
        $region28: #{tpu_custom_call.1} parent=23 // pred_fallthru
          _
        // Predicated region
        $region29: #{tpu_custom_call.1} parent=23 // pred_check
          %p206 = pneg %p64
        $region30: #{tpu_custom_call.1} parent=23 // pred_check_branch
          %208 = sbr.rel (%p206) target = $region32
        $region31: #{tpu_custom_call.1} parent=23 // pred_region
          %s209 = smul.u32 2, %s18
          %s210 = ssub.s32 3, %s209
          %p211 = scmp.lt.s32.totalorder %s210, 2
          %s212 = scalar_select %p211, %s210, 2
          %s213 = smul.u32 128, %s212
          %p214 = scmp.lt.s32.totalorder %s209, 2
          %s215 = scalar_select %p214, %s209, 2
          %s216 = smul.addr %s215, 8
          %s217 = scalar_lea.vmem %s1, %s216
          %s218 = smul.u32 2, %s18
          %s219 = ssub.s32 3, %s218
          %p220 = scmp.lt.s32.totalorder %s219, 2
          %s221 = scalar_select %p220, %s219, 2
          %s222 = smul.u32 128, %s221
        $region32: #{tpu_custom_call.1} parent=23 // pred_fallthru
          _
      $region24: #{tpu_custom_call.1} parent=5 // pred_fallthru
        _
      %p223 = scmp.le.s32.totalorder 1, %s18
      %p224 = scmp.lt.s32.totalorder %s18, 3
      %p225 = pnand %p223, %p224
      %p226 = pneg %p225
      // Predicated region
      $region33: #{tpu_custom_call.1} parent=5 // pred_check
        _
      $region34: #{tpu_custom_call.1} parent=5 // pred_check_branch
        %228 = sbr.rel (%p225) target = $region36
      $region35: #{tpu_custom_call.1} parent=5 // pred_region
        %s229 = ssub.s32 %s18, 1
        %s230 = smul.u32 2, %s23
        %s231 = ssub.s32 3, %s230
        %p232 = scmp.lt.s32.totalorder %s231, 2
        %s233 = scalar_select %p232, %s231, 2
        %s234 = smul.u32 128, %s233
        %p235 = scmp.lt.s32.totalorder %s230, 2
        %s236 = scalar_select %p235, %s230, 2
        %s237 = smul.addr %s236, 8
        %s238 = scalar_lea.vmem %s0, %s237
        %p239 = pneg %p44
        %p240 = pneg %p41
        %s241 = smul.u32 2, %s23
        %s242 = ssub.s32 3, %s241
        %p243 = scmp.lt.s32.totalorder %s242, 2
        %s244 = scalar_select %p243, %s242, 2
        %s245 = smul.u32 128, %s244
        %p246 = scmp.lt.s32.totalorder %s241, 2
        %s247 = scalar_select %p246, %s241, 2
        %s248 = smul.addr %s247, 8
        %s249 = scalar_lea.vmem %s1, %s248
        %p250 = pneg %p70
        %p251 = pneg %p67
        %p252 = pneg %p91
        %p253 = pneg %p88
        %p254 = pneg %p112
        %p255 = pneg %p109
        %p256 = pneg %p138
        %p257 = pneg %p135
        %s258 = sand.u32 %s125, 1
        %s259 = scalar_lea.sflag [#allocation3], %s258
        %s260 = sand.u32 %s125, 1
        %s261 = smul.addr %s260, 16
        %s262 = scalar_lea.vmem [#allocation2], %s261
        %p263 = pneg %p164
        %p264 = pneg %p161
        %s265 = sand.u32 %s151, 1
        %s266 = scalar_lea.sflag [#allocation5], %s265
        %s267 = sand.u32 %s151, 1
        %s268 = smul.addr %s267, 16
        %s269 = scalar_lea.vmem [#allocation4], %s268
        %s270 = smul.u32 2, %s23
        %s271 = ssub.s32 3, %s270
        %p272 = scmp.lt.s32.totalorder %s271, 2
        %s273 = scalar_select %p272, %s271, 2
        %s274 = smul.u32 128, %s273
        %p275 = scmp.lt.s32.totalorder %s270, 2
        %s276 = scalar_select %p275, %s270, 2
        %s277 = smul.addr %s276, 8
        %s278 = scalar_lea.vmem %s0, %s277
        %s279 = smul.u32 2, %s23
        %s280 = ssub.s32 3, %s279
        %p281 = scmp.lt.s32.totalorder %s280, 2
        %s282 = scalar_select %p281, %s280, 2
        %s283 = smul.u32 128, %s282
        %s284 = smul.u32 2, %s23
        %s285 = ssub.s32 3, %s284
        %p286 = scmp.lt.s32.totalorder %s285, 2
        %s287 = scalar_select %p286, %s285, 2
        %s288 = smul.u32 128, %s287
        %p289 = scmp.lt.s32.totalorder %s284, 2
        %s290 = scalar_select %p289, %s284, 2
        %s291 = smul.addr %s290, 8
        %s292 = scalar_lea.vmem %s1, %s291
        %s293 = smul.u32 2, %s23
        %s294 = ssub.s32 3, %s293
        %p295 = scmp.lt.s32.totalorder %s294, 2
        %s296 = scalar_select %p295, %s294, 2
        %s297 = smul.u32 128, %s296
        %s298 = smul.u32 2, %s23
        %s299 = ssub.s32 3, %s298
        %p300 = scmp.lt.s32.totalorder %s299, 2
        %s301 = scalar_select %p300, %s299, 2
        %s302 = smul.u32 128, %s301
        %s303 = smul.u32 2, %s23
        %s304 = ssub.s32 3, %s303
        %p305 = scmp.lt.s32.totalorder %s304, 2
        %s306 = scalar_select %p305, %s304, 2
        %s307 = smul.u32 128, %s306
        %v308 = vld [vmem:[%s278] sm:$0xff]
        %v309 = vld [vmem:[%s278 + $0x8] sm:$0xff]
        %v310 = vld [vmem:[%s2] sm:$0xff]
        %v311 = vld [vmem:[%s2 + $0x8] sm:$0xf]
        %v312 = vld [vmem:[%s292] sm:$0xff]
        %v313 = vld [vmem:[%s292 + $0x8] sm:$0xff]
        %v314 = vld [vmem:[%s3] sm:$0x1f]
        %vm315 = vcmask 39936
        %v317 = vsel %vm315, %v312, 0
        %v320 = vsel %vm315, %v313, 0
        %vm322 = vcmask 1044480
        %v324 = vsel %vm322, %v314, 0
        %326 = vmatprep.subr.mxu0 0.0
        %v327 = vand.u32 %v324, 4294901760
        %328 = vmatpush1.msra.mxu0 %v327
        %329 = vmatprep.subr.mxu0 0.0
        %330 = vmatpush1.msra.mxu0 0.0
        %331 = vmatprep.subr.mxu0 0.0
        %332 = vmatpush1.msra.mxu0 0.0
        %333 = vmatprep.subr.mxu0 0.0
        %334 = vmatpush1.msra.mxu0 0.0
        %335 = vmatprep.subr.mxu0 0.0
        %336 = vmatpush1.msra.mxu0 0.0
        %337 = vmatprep.subr.mxu0 0.0
        %338 = vmatpush1.msra.mxu0 0.0
        %339 = vmatprep.subr.mxu0 0.0
        %340 = vmatpush1.msra.mxu0 0.0
        %341 = vmatprep.subr.mxu0 0.0
        %342 = vmatpush1.msra.mxu0 0.0
        %343 = vmatprep.subr.mxu0 0.0
        %344 = vmatpush1.msra.mxu0 0.0
        %345 = vmatprep.subr.mxu0 0.0
        %346 = vmatpush1.msra.mxu0 0.0
        %347 = vmatprep.subr.mxu0 0.0
        %348 = vmatpush1.msra.mxu0 0.0
        %349 = vmatprep.subr.mxu0 0.0
        %350 = vmatpush1.msra.mxu0 0.0
        %351 = vmatprep.subr.mxu0 0.0
        %352 = vmatpush1.msra.mxu0 0.0
        %353 = vmatprep.subr.mxu0 0.0
        %354 = vmatpush1.msra.mxu0 0.0
        %355 = vmatprep.subr.mxu0 0.0
        %356 = vmatpush1.msra.mxu0 0.0
        %357 = vmatprep.subr.mxu0 0.0
        %358 = vmatpush1.msra.mxu0 0.0
        %359 = vmatprep.subr.mxu0 0.0
        %360 = vmatpush1.msra.mxu0 0.0
        %361 = vmatprep.subr.mxu0 0.0
        %362 = vmatpush1.msra.mxu0 0.0
        %363 = vmatprep.subr.mxu0 0.0
        %364 = vmatpush1.msra.mxu0 0.0
        %365 = vmatprep.subr.mxu0 0.0
        %366 = vmatpush1.msra.mxu0 0.0
        %367 = vmatprep.subr.mxu0 0.0
        %368 = vmatpush1.msra.mxu0 0.0
        %369 = vmatprep.subr.mxu0 0.0
        %370 = vmatpush1.msra.mxu0 0.0
        %371 = vmatprep.subr.mxu0 0.0
        %372 = vmatpush1.msra.mxu0 0.0
        %373 = vmatprep.subr.mxu0 0.0
        %374 = vmatpush1.msra.mxu0 0.0
        %375 = vmatprep.subr.mxu0 0.0
        %376 = vmatpush1.msra.mxu0 0.0
        %377 = vmatprep.subr.mxu0 0.0
        %378 = vmatpush1.msra.mxu0 0.0
        %379 = vmatprep.subr.mxu0 0.0
        %380 = vmatpush1.msra.mxu0 0.0
        %381 = vmatprep.subr.mxu0 0.0
        %382 = vmatpush1.msra.mxu0 0.0
        %383 = vmatprep.subr.mxu0 0.0
        %384 = vmatpush1.msra.mxu0 0.0
        %385 = vmatprep.subr.mxu0 0.0
        %386 = vmatpush1.msra.mxu0 0.0
        %387 = vmatprep.subr.mxu0 0.0
        %388 = vmatpush1.msra.mxu0 0.0
        %389 = vmatprep.subr.mxu0 0.0
        %390 = vmatpush1.msra.mxu0 0.0
        %391 = vmatprep.mubr.f32.mxu0 0.0
        %v392 = vand.u32 %v317, 4294901760
        %v393 = vsub.f32 %v317, %v392
        %v394 = vand.u32 %v393, 4294901760
        %v395 = vsub.f32 %v393, %v394
        %v396 = vand.u32 %v395, 4294901760
        %397 = vmatmul.mubr.f32.gmra.mrb[0].mxu0 %v396
        %v398 = vpop.f32.mrb[0].mxu0
        %v399 = vadd.f32 0.0, %v398
        %v400 = vpop.f32.mrb[0].mxu0
        %401 = vmatprep.mubr.f32.mxu0 0.0
        %v402 = vand.u32 %v320, 4294901760
        %v403 = vsub.f32 %v320, %v402
        %v404 = vand.u32 %v403, 4294901760
        %v405 = vsub.f32 %v403, %v404
        %v406 = vand.u32 %v405, 4294901760
        %407 = vmatmul.mubr.f32.gmra.mrb[0].mxu0 %v406
        %v408 = vpop.f32.mrb[0].mxu0
        %v409 = vadd.f32 0.0, %v408
        %v410 = vpop.f32.mrb[0].mxu0
        %411 = vdwg.mxu0
        %412 = vmatprep.subr.mxu0 0.0
        %v413 = vand.u32 %v324, 4294901760
        %v414 = vsub.f32 %v324, %v413
        %v415 = vand.u32 %v414, 4294901760
        %v416 = vsub.f32 %v414, %v415
        %v417 = vand.u32 %v416, 4294901760
        %418 = vmatpush1.msra.mxu0 %v417
        %419 = vmatprep.subr.mxu0 0.0
        %420 = vmatpush1.msra.mxu0 0.0
        %421 = vmatprep.subr.mxu0 0.0
        %422 = vmatpush1.msra.mxu0 0.0
        %423 = vmatprep.subr.mxu0 0.0
        %424 = vmatpush1.msra.mxu0 0.0
        %425 = vmatprep.subr.mxu0 0.0
        %426 = vmatpush1.msra.mxu0 0.0
        %427 = vmatprep.subr.mxu0 0.0
        %428 = vmatpush1.msra.mxu0 0.0
        %429 = vmatprep.subr.mxu0 0.0
        %430 = vmatpush1.msra.mxu0 0.0
        %431 = vmatprep.subr.mxu0 0.0
        %432 = vmatpush1.msra.mxu0 0.0
        %433 = vmatprep.subr.mxu0 0.0
        %434 = vmatpush1.msra.mxu0 0.0
        %435 = vmatprep.subr.mxu0 0.0
        %436 = vmatpush1.msra.mxu0 0.0
        %437 = vmatprep.subr.mxu0 0.0
        %438 = vmatpush1.msra.mxu0 0.0
        %439 = vmatprep.subr.mxu0 0.0
        %440 = vmatpush1.msra.mxu0 0.0
        %441 = vmatprep.subr.mxu0 0.0
        %442 = vmatpush1.msra.mxu0 0.0
        %443 = vmatprep.subr.mxu0 0.0
        %444 = vmatpush1.msra.mxu0 0.0
        %445 = vmatprep.subr.mxu0 0.0
        %446 = vmatpush1.msra.mxu0 0.0
        %447 = vmatprep.subr.mxu0 0.0
        %448 = vmatpush1.msra.mxu0 0.0
        %449 = vmatprep.subr.mxu0 0.0
        %450 = vmatpush1.msra.mxu0 0.0
        %451 = vmatprep.subr.mxu0 0.0
        %452 = vmatpush1.msra.mxu0 0.0
        %453 = vmatprep.subr.mxu0 0.0
        %454 = vmatpush1.msra.mxu0 0.0
        %455 = vmatprep.subr.mxu0 0.0
        %456 = vmatpush1.msra.mxu0 0.0
        %457 = vmatprep.subr.mxu0 0.0
        %458 = vmatpush1.msra.mxu0 0.0
        %459 = vmatprep.subr.mxu0 0.0
        %460 = vmatpush1.msra.mxu0 0.0
        %461 = vmatprep.subr.mxu0 0.0
        %462 = vmatpush1.msra.mxu0 0.0
        %463 = vmatprep.subr.mxu0 0.0
        %464 = vmatpush1.msra.mxu0 0.0
        %465 = vmatprep.subr.mxu0 0.0
        %466 = vmatpush1.msra.mxu0 0.0
        %467 = vmatprep.subr.mxu0 0.0
        %468 = vmatpush1.msra.mxu0 0.0
        %469 = vmatprep.subr.mxu0 0.0
        %470 = vmatpush1.msra.mxu0 0.0
        %471 = vmatprep.subr.mxu0 0.0
        %472 = vmatpush1.msra.mxu0 0.0
        %473 = vmatprep.subr.mxu0 0.0
        %474 = vmatpush1.msra.mxu0 0.0
        %475 = vmatprep.subr.mxu0 0.0
        %476 = vmatpush1.msra.mxu0 0.0
        %477 = vmatprep.subr.mxu0 0.0
        %478 = vmatpush1.msra.mxu0 0.0
        %479 = vmatprep.subr.mxu0 0.0
        %480 = vmatpush1.msra.mxu0 0.0
        %481 = vmatprep.mubr.f32.mxu0 0.0
        %v482 = vand.u32 %v317, 4294901760
        %483 = vmatmul.mubr.f32.gmra.mrb[0].mxu0 %v482
        %v484 = vpop.f32.mrb[0].mxu0
        %v485 = vadd.f32 %v399, %v484
        %v486 = vpop.f32.mrb[0].mxu0
        %487 = vmatprep.mubr.f32.mxu0 0.0
        %v488 = vand.u32 %v320, 4294901760
        %489 = vmatmul.mubr.f32.gmra.mrb[0].mxu0 %v488
        %v490 = vpop.f32.mrb[0].mxu0
        %v491 = vadd.f32 %v409, %v490
        %v492 = vpop.f32.mrb[0].mxu0
        %493 = vdwg.mxu0
        %494 = vmatprep.subr.mxu0 0.0
        %v495 = vand.u32 %v324, 4294901760
        %v496 = vsub.f32 %v324, %v495
        %497 = vmatpush1.msra.mxu0 %v496
        %498 = vmatprep.subr.mxu0 0.0
        %499 = vmatpush1.msra.mxu0 0.0
        %500 = vmatprep.subr.mxu0 0.0
        %501 = vmatpush1.msra.mxu0 0.0
        %502 = vmatprep.subr.mxu0 0.0
        %503 = vmatpush1.msra.mxu0 0.0
        %504 = vmatprep.subr.mxu0 0.0
        %505 = vmatpush1.msra.mxu0 0.0
        %506 = vmatprep.subr.mxu0 0.0
        %507 = vmatpush1.msra.mxu0 0.0
        %508 = vmatprep.subr.mxu0 0.0
        %509 = vmatpush1.msra.mxu0 0.0
        %510 = vmatprep.subr.mxu0 0.0
        %511 = vmatpush1.msra.mxu0 0.0
        %512 = vmatprep.subr.mxu0 0.0
        %513 = vmatpush1.msra.mxu0 0.0
        %514 = vmatprep.subr.mxu0 0.0
        %515 = vmatpush1.msra.mxu0 0.0
        %516 = vmatprep.subr.mxu0 0.0
        %517 = vmatpush1.msra.mxu0 0.0
        %518 = vmatprep.subr.mxu0 0.0
        %519 = vmatpush1.msra.mxu0 0.0
        %520 = vmatprep.subr.mxu0 0.0
        %521 = vmatpush1.msra.mxu0 0.0
        %522 = vmatprep.subr.mxu0 0.0
        %523 = vmatpush1.msra.mxu0 0.0
        %524 = vmatprep.subr.mxu0 0.0
        %525 = vmatpush1.msra.mxu0 0.0
        %526 = vmatprep.subr.mxu0 0.0
        %527 = vmatpush1.msra.mxu0 0.0
        %528 = vmatprep.subr.mxu0 0.0
        %529 = vmatpush1.msra.mxu0 0.0
        %530 = vmatprep.subr.mxu0 0.0
        %531 = vmatpush1.msra.mxu0 0.0
        %532 = vmatprep.subr.mxu0 0.0
        %533 = vmatpush1.msra.mxu0 0.0
        %534 = vmatprep.subr.mxu0 0.0
        %535 = vmatpush1.msra.mxu0 0.0
        %536 = vmatprep.subr.mxu0 0.0
        %537 = vmatpush1.msra.mxu0 0.0
        %538 = vmatprep.subr.mxu0 0.0
        %539 = vmatpush1.msra.mxu0 0.0
        %540 = vmatprep.subr.mxu0 0.0
        %541 = vmatpush1.msra.mxu0 0.0
        %542 = vmatprep.subr.mxu0 0.0
        %543 = vmatpush1.msra.mxu0 0.0
        %544 = vmatprep.subr.mxu0 0.0
        %545 = vmatpush1.msra.mxu0 0.0
        %546 = vmatprep.subr.mxu0 0.0
        %547 = vmatpush1.msra.mxu0 0.0
        %548 = vmatprep.subr.mxu0 0.0
        %549 = vmatpush1.msra.mxu0 0.0
        %550 = vmatprep.subr.mxu0 0.0
        %551 = vmatpush1.msra.mxu0 0.0
        %552 = vmatprep.subr.mxu0 0.0
        %553 = vmatpush1.msra.mxu0 0.0
        %554 = vmatprep.subr.mxu0 0.0
        %555 = vmatpush1.msra.mxu0 0.0
        %556 = vmatprep.subr.mxu0 0.0
        %557 = vmatpush1.msra.mxu0 0.0
        %558 = vmatprep.subr.mxu0 0.0
        %559 = vmatpush1.msra.mxu0 0.0
        %560 = vmatprep.mubr.f32.mxu0 0.0
        %v561 = vand.u32 %v317, 4294901760
        %v562 = vsub.f32 %v317, %v561
        %563 = vmatmul.mubr.f32.gmra.mrb[0].mxu0 %v562
        %v564 = vpop.f32.mrb[0].mxu0
        %v565 = vadd.f32 %v485, %v564
        %v566 = vpop.f32.mrb[0].mxu0
        %567 = vmatprep.mubr.f32.mxu0 0.0
        %v568 = vand.u32 %v320, 4294901760
        %v569 = vsub.f32 %v320, %v568
        %570 = vmatmul.mubr.f32.gmra.mrb[0].mxu0 %v569
        %v571 = vpop.f32.mrb[0].mxu0
        %v572 = vadd.f32 %v491, %v571
        %v573 = vpop.f32.mrb[0].mxu0
        %574 = vdwg.mxu0
        %575 = vmatprep.subr.mxu0 0.0
        %v576 = vand.u32 %v324, 4294901760
        %577 = vmatpush1.msra.mxu0 %v576
        %578 = vmatprep.subr.mxu0 0.0
        %579 = vmatpush1.msra.mxu0 0.0
        %580 = vmatprep.subr.mxu0 0.0
        %581 = vmatpush1.msra.mxu0 0.0
        %582 = vmatprep.subr.mxu0 0.0
        %583 = vmatpush1.msra.mxu0 0.0
        %584 = vmatprep.subr.mxu0 0.0
        %585 = vmatpush1.msra.mxu0 0.0
        %586 = vmatprep.subr.mxu0 0.0
        %587 = vmatpush1.msra.mxu0 0.0
        %588 = vmatprep.subr.mxu0 0.0
        %589 = vmatpush1.msra.mxu0 0.0
        %590 = vmatprep.subr.mxu0 0.0
        %591 = vmatpush1.msra.mxu0 0.0
        %592 = vmatprep.subr.mxu0 0.0
        %593 = vmatpush1.msra.mxu0 0.0
        %594 = vmatprep.subr.mxu0 0.0
        %595 = vmatpush1.msra.mxu0 0.0
        %596 = vmatprep.subr.mxu0 0.0
        %597 = vmatpush1.msra.mxu0 0.0
        %598 = vmatprep.subr.mxu0 0.0
        %599 = vmatpush1.msra.mxu0 0.0
        %600 = vmatprep.subr.mxu0 0.0
        %601 = vmatpush1.msra.mxu0 0.0
        %602 = vmatprep.subr.mxu0 0.0
        %603 = vmatpush1.msra.mxu0 0.0
        %604 = vmatprep.subr.mxu0 0.0
        %605 = vmatpush1.msra.mxu0 0.0
        %606 = vmatprep.subr.mxu0 0.0
        %607 = vmatpush1.msra.mxu0 0.0
        %608 = vmatprep.subr.mxu0 0.0
        %609 = vmatpush1.msra.mxu0 0.0
        %610 = vmatprep.subr.mxu0 0.0
        %611 = vmatpush1.msra.mxu0 0.0
        %612 = vmatprep.subr.mxu0 0.0
        %613 = vmatpush1.msra.mxu0 0.0
        %614 = vmatprep.subr.mxu0 0.0
        %615 = vmatpush1.msra.mxu0 0.0
        %616 = vmatprep.subr.mxu0 0.0
        %617 = vmatpush1.msra.mxu0 0.0
        %618 = vmatprep.subr.mxu0 0.0
        %619 = vmatpush1.msra.mxu0 0.0
        %620 = vmatprep.subr.mxu0 0.0
        %621 = vmatpush1.msra.mxu0 0.0
        %622 = vmatprep.subr.mxu0 0.0
        %623 = vmatpush1.msra.mxu0 0.0
        %624 = vmatprep.subr.mxu0 0.0
        %625 = vmatpush1.msra.mxu0 0.0
        %626 = vmatprep.subr.mxu0 0.0
        %627 = vmatpush1.msra.mxu0 0.0
        %628 = vmatprep.subr.mxu0 0.0
        %629 = vmatpush1.msra.mxu0 0.0
        %630 = vmatprep.subr.mxu0 0.0
        %631 = vmatpush1.msra.mxu0 0.0
        %632 = vmatprep.subr.mxu0 0.0
        %633 = vmatpush1.msra.mxu0 0.0
        %634 = vmatprep.subr.mxu0 0.0
        %635 = vmatpush1.msra.mxu0 0.0
        %636 = vmatprep.subr.mxu0 0.0
        %637 = vmatpush1.msra.mxu0 0.0
        %638 = vmatprep.subr.mxu0 0.0
        %639 = vmatpush1.msra.mxu0 0.0
        %640 = vmatprep.mubr.f32.mxu0 0.0
        %v641 = vand.u32 %v317, 4294901760
        %v642 = vsub.f32 %v317, %v641
        %v643 = vand.u32 %v642, 4294901760
        %644 = vmatmul.mubr.f32.gmra.mrb[0].mxu0 %v643
        %v645 = vpop.f32.mrb[0].mxu0
        %v646 = vadd.f32 %v565, %v645
        %v647 = vpop.f32.mrb[0].mxu0
        %648 = vmatprep.mubr.f32.mxu0 0.0
        %v649 = vand.u32 %v320, 4294901760
        %v650 = vsub.f32 %v320, %v649
        %v651 = vand.u32 %v650, 4294901760
        %652 = vmatmul.mubr.f32.gmra.mrb[0].mxu0 %v651
        %v653 = vpop.f32.mrb[0].mxu0
        %v654 = vadd.f32 %v572, %v653
        %v655 = vpop.f32.mrb[0].mxu0
        %656 = vdwg.mxu0
        %657 = vmatprep.subr.mxu0 0.0
        %v658 = vand.u32 %v324, 4294901760
        %v659 = vsub.f32 %v324, %v658
        %v660 = vand.u32 %v659, 4294901760
        %661 = vmatpush1.msra.mxu0 %v660
        %662 = vmatprep.subr.mxu0 0.0
        %663 = vmatpush1.msra.mxu0 0.0
        %664 = vmatprep.subr.mxu0 0.0
        %665 = vmatpush1.msra.mxu0 0.0
        %666 = vmatprep.subr.mxu0 0.0
        %667 = vmatpush1.msra.mxu0 0.0
        %668 = vmatprep.subr.mxu0 0.0
        %669 = vmatpush1.msra.mxu0 0.0
        %670 = vmatprep.subr.mxu0 0.0
        %671 = vmatpush1.msra.mxu0 0.0
        %672 = vmatprep.subr.mxu0 0.0
        %673 = vmatpush1.msra.mxu0 0.0
        %674 = vmatprep.subr.mxu0 0.0
        %675 = vmatpush1.msra.mxu0 0.0
        %676 = vmatprep.subr.mxu0 0.0
        %677 = vmatpush1.msra.mxu0 0.0
        %678 = vmatprep.subr.mxu0 0.0
        %679 = vmatpush1.msra.mxu0 0.0
        %680 = vmatprep.subr.mxu0 0.0
        %681 = vmatpush1.msra.mxu0 0.0
        %682 = vmatprep.subr.mxu0 0.0
        %683 = vmatpush1.msra.mxu0 0.0
        %684 = vmatprep.subr.mxu0 0.0
        %685 = vmatpush1.msra.mxu0 0.0
        %686 = vmatprep.subr.mxu0 0.0
        %687 = vmatpush1.msra.mxu0 0.0
        %688 = vmatprep.subr.mxu0 0.0
        %689 = vmatpush1.msra.mxu0 0.0
        %690 = vmatprep.subr.mxu0 0.0
        %691 = vmatpush1.msra.mxu0 0.0
        %692 = vmatprep.subr.mxu0 0.0
        %693 = vmatpush1.msra.mxu0 0.0
        %694 = vmatprep.subr.mxu0 0.0
        %695 = vmatpush1.msra.mxu0 0.0
        %696 = vmatprep.subr.mxu0 0.0
        %697 = vmatpush1.msra.mxu0 0.0
        %698 = vmatprep.subr.mxu0 0.0
        %699 = vmatpush1.msra.mxu0 0.0
        %700 = vmatprep.subr.mxu0 0.0
        %701 = vmatpush1.msra.mxu0 0.0
        %702 = vmatprep.subr.mxu0 0.0
        %703 = vmatpush1.msra.mxu0 0.0
        %704 = vmatprep.subr.mxu0 0.0
        %705 = vmatpush1.msra.mxu0 0.0
        %706 = vmatprep.subr.mxu0 0.0
        %707 = vmatpush1.msra.mxu0 0.0
        %708 = vmatprep.subr.mxu0 0.0
        %709 = vmatpush1.msra.mxu0 0.0
        %710 = vmatprep.subr.mxu0 0.0
        %711 = vmatpush1.msra.mxu0 0.0
        %712 = vmatprep.subr.mxu0 0.0
        %713 = vmatpush1.msra.mxu0 0.0
        %714 = vmatprep.subr.mxu0 0.0
        %715 = vmatpush1.msra.mxu0 0.0
        %716 = vmatprep.subr.mxu0 0.0
        %717 = vmatpush1.msra.mxu0 0.0
        %718 = vmatprep.subr.mxu0 0.0
        %719 = vmatpush1.msra.mxu0 0.0
        %720 = vmatprep.subr.mxu0 0.0
        %721 = vmatpush1.msra.mxu0 0.0
        %722 = vmatprep.subr.mxu0 0.0
        %723 = vmatpush1.msra.mxu0 0.0
        %724 = vmatprep.mubr.f32.mxu0 0.0
        %v725 = vand.u32 %v317, 4294901760
        %726 = vmatmul.mubr.f32.gmra.mrb[0].mxu0 %v725
        %v727 = vpop.f32.mrb[0].mxu0
        %v728 = vadd.f32 %v646, %v727
        %v729 = vpop.f32.mrb[0].mxu0
        %730 = vmatprep.mubr.f32.mxu0 0.0
        %v731 = vand.u32 %v320, 4294901760
        %732 = vmatmul.mubr.f32.gmra.mrb[0].mxu0 %v731
        %v733 = vpop.f32.mrb[0].mxu0
        %v734 = vadd.f32 %v654, %v733
        %v735 = vpop.f32.mrb[0].mxu0
        %736 = vdwg.mxu0
        %737 = vmatprep.subr.mxu0 0.0
        %v738 = vand.u32 %v324, 4294901760
        %739 = vmatpush1.msra.mxu0 %v738
        %740 = vmatprep.subr.mxu0 0.0
        %741 = vmatpush1.msra.mxu0 0.0
        %742 = vmatprep.subr.mxu0 0.0
        %743 = vmatpush1.msra.mxu0 0.0
        %744 = vmatprep.subr.mxu0 0.0
        %745 = vmatpush1.msra.mxu0 0.0
        %746 = vmatprep.subr.mxu0 0.0
        %747 = vmatpush1.msra.mxu0 0.0
        %748 = vmatprep.subr.mxu0 0.0
        %749 = vmatpush1.msra.mxu0 0.0
        %750 = vmatprep.subr.mxu0 0.0
        %751 = vmatpush1.msra.mxu0 0.0
        %752 = vmatprep.subr.mxu0 0.0
        %753 = vmatpush1.msra.mxu0 0.0
        %754 = vmatprep.subr.mxu0 0.0
        %755 = vmatpush1.msra.mxu0 0.0
        %756 = vmatprep.subr.mxu0 0.0
        %757 = vmatpush1.msra.mxu0 0.0
        %758 = vmatprep.subr.mxu0 0.0
        %759 = vmatpush1.msra.mxu0 0.0
        %760 = vmatprep.subr.mxu0 0.0
        %761 = vmatpush1.msra.mxu0 0.0
        %762 = vmatprep.subr.mxu0 0.0
        %763 = vmatpush1.msra.mxu0 0.0
        %764 = vmatprep.subr.mxu0 0.0
        %765 = vmatpush1.msra.mxu0 0.0
        %766 = vmatprep.subr.mxu0 0.0
        %767 = vmatpush1.msra.mxu0 0.0
        %768 = vmatprep.subr.mxu0 0.0
        %769 = vmatpush1.msra.mxu0 0.0
        %770 = vmatprep.subr.mxu0 0.0
        %771 = vmatpush1.msra.mxu0 0.0
        %772 = vmatprep.subr.mxu0 0.0
        %773 = vmatpush1.msra.mxu0 0.0
        %774 = vmatprep.subr.mxu0 0.0
        %775 = vmatpush1.msra.mxu0 0.0
        %776 = vmatprep.subr.mxu0 0.0
        %777 = vmatpush1.msra.mxu0 0.0
        %778 = vmatprep.subr.mxu0 0.0
        %779 = vmatpush1.msra.mxu0 0.0
        %780 = vmatprep.subr.mxu0 0.0
        %781 = vmatpush1.msra.mxu0 0.0
        %782 = vmatprep.subr.mxu0 0.0
        %783 = vmatpush1.msra.mxu0 0.0
        %784 = vmatprep.subr.mxu0 0.0
        %785 = vmatpush1.msra.mxu0 0.0
        %786 = vmatprep.subr.mxu0 0.0
        %787 = vmatpush1.msra.mxu0 0.0
        %788 = vmatprep.subr.mxu0 0.0
        %789 = vmatpush1.msra.mxu0 0.0
        %790 = vmatprep.subr.mxu0 0.0
        %791 = vmatpush1.msra.mxu0 0.0
        %792 = vmatprep.subr.mxu0 0.0
        %793 = vmatpush1.msra.mxu0 0.0
        %794 = vmatprep.subr.mxu0 0.0
        %795 = vmatpush1.msra.mxu0 0.0
        %796 = vmatprep.subr.mxu0 0.0
        %797 = vmatpush1.msra.mxu0 0.0
        %798 = vmatprep.subr.mxu0 0.0
        %799 = vmatpush1.msra.mxu0 0.0
        %800 = vmatprep.subr.mxu0 0.0
        %801 = vmatpush1.msra.mxu0 0.0
        %802 = vmatprep.mubr.f32.mxu0 0.0
        %v803 = vand.u32 %v317, 4294901760
        %804 = vmatmul.mubr.f32.gmra.mrb[0].mxu0 %v803
        %v805 = vpop.f32.mrb[0].mxu0
        %v806 = vadd.f32 %v728, %v805
        %v807 = vpop.f32.mrb[0].mxu0
        %808 = vmatprep.mubr.f32.mxu0 0.0
        %v809 = vand.u32 %v320, 4294901760
        %810 = vmatmul.mubr.f32.gmra.mrb[0].mxu0 %v809
        %v811 = vpop.f32.mrb[0].mxu0
        %v812 = vadd.f32 %v734, %v811
        %v813 = vpop.f32.mrb[0].mxu0
        %814 = vdwg.mxu0
        %vm815 = vcmask 97280
        %v817 = vsel %vm815, %v308, 0
        %v820 = vsel %vm815, %v309, 0
        %vm822 = vcmask 1043456
        %v824 = vsel %vm822, %v311, 0
        %826 = vmatprep.subr.mxu0 0.0
        %v827 = vand.u32 %v310, 4294901760
        %828 = vmatpush1.msra.mxu0 %v827
        %829 = vmatprep.subr.mxu0 0.0
        %v830 = vand.u32 %v824, 4294901760
        %831 = vmatpush1.msra.mxu0 %v830
        %832 = vmatprep.subr.mxu0 0.0
        %833 = vmatpush1.msra.mxu0 0.0
        %834 = vmatprep.subr.mxu0 0.0
        %835 = vmatpush1.msra.mxu0 0.0
        %836 = vmatprep.subr.mxu0 0.0
        %837 = vmatpush1.msra.mxu0 0.0
        %838 = vmatprep.subr.mxu0 0.0
        %839 = vmatpush1.msra.mxu0 0.0
        %840 = vmatprep.subr.mxu0 0.0
        %841 = vmatpush1.msra.mxu0 0.0
        %842 = vmatprep.subr.mxu0 0.0
        %843 = vmatpush1.msra.mxu0 0.0
        %844 = vmatprep.subr.mxu0 0.0
        %845 = vmatpush1.msra.mxu0 0.0
        %846 = vmatprep.subr.mxu0 0.0
        %847 = vmatpush1.msra.mxu0 0.0
        %848 = vmatprep.subr.mxu0 0.0
        %849 = vmatpush1.msra.mxu0 0.0
        %850 = vmatprep.subr.mxu0 0.0
        %851 = vmatpush1.msra.mxu0 0.0
        %852 = vmatprep.subr.mxu0 0.0
        %853 = vmatpush1.msra.mxu0 0.0
        %854 = vmatprep.subr.mxu0 0.0
        %855 = vmatpush1.msra.mxu0 0.0
        %856 = vmatprep.subr.mxu0 0.0
        %857 = vmatpush1.msra.mxu0 0.0
        %858 = vmatprep.subr.mxu0 0.0
        %859 = vmatpush1.msra.mxu0 0.0
        %860 = vmatprep.subr.mxu0 0.0
        %861 = vmatpush1.msra.mxu0 0.0
        %862 = vmatprep.subr.mxu0 0.0
        %863 = vmatpush1.msra.mxu0 0.0
        %864 = vmatprep.subr.mxu0 0.0
        %865 = vmatpush1.msra.mxu0 0.0
        %866 = vmatprep.subr.mxu0 0.0
        %867 = vmatpush1.msra.mxu0 0.0
        %868 = vmatprep.subr.mxu0 0.0
        %869 = vmatpush1.msra.mxu0 0.0
        %870 = vmatprep.subr.mxu0 0.0
        %871 = vmatpush1.msra.mxu0 0.0
        %872 = vmatprep.subr.mxu0 0.0
        %873 = vmatpush1.msra.mxu0 0.0
        %874 = vmatprep.subr.mxu0 0.0
        %875 = vmatpush1.msra.mxu0 0.0
        %876 = vmatprep.subr.mxu0 0.0
        %877 = vmatpush1.msra.mxu0 0.0
        %878 = vmatprep.subr.mxu0 0.0
        %879 = vmatpush1.msra.mxu0 0.0
        %880 = vmatprep.subr.mxu0 0.0
        %881 = vmatpush1.msra.mxu0 0.0
        %882 = vmatprep.subr.mxu0 0.0
        %883 = vmatpush1.msra.mxu0 0.0
        %884 = vmatprep.subr.mxu0 0.0
        %885 = vmatpush1.msra.mxu0 0.0
        %886 = vmatprep.subr.mxu0 0.0
        %887 = vmatpush1.msra.mxu0 0.0
        %888 = vmatprep.subr.mxu0 0.0
        %889 = vmatpush1.msra.mxu0 0.0
        %890 = vmatprep.subr.mxu0 0.0
        %891 = vmatpush1.msra.mxu0 0.0
        %892 = vmatprep.mubr.f32.mxu0 0.0
        %v893 = vand.u32 %v817, 4294901760
        %v894 = vsub.f32 %v817, %v893
        %v895 = vand.u32 %v894, 4294901760
        %v896 = vsub.f32 %v894, %v895
        %v897 = vand.u32 %v896, 4294901760
        %898 = vmatmul.mubr.f32.gmra.mrb[0].mxu0 %v897
        %v899 = vpop.f32.mrb[0].mxu0
        %v900 = vadd.f32 %v806, %v899
        %v901 = vpop.f32.mrb[0].mxu0
        %902 = vmatprep.mubr.f32.mxu0 0.0
        %v903 = vand.u32 %v820, 4294901760
        %v904 = vsub.f32 %v820, %v903
        %v905 = vand.u32 %v904, 4294901760
        %v906 = vsub.f32 %v904, %v905
        %v907 = vand.u32 %v906, 4294901760
        %908 = vmatmul.mubr.f32.gmra.mrb[0].mxu0 %v907
        %v909 = vpop.f32.mrb[0].mxu0
        %v910 = vadd.f32 %v812, %v909
        %v911 = vpop.f32.mrb[0].mxu0
        %912 = vdwg.mxu0
        %913 = vmatprep.subr.mxu0 0.0
        %v914 = vand.u32 %v310, 4294901760
        %v915 = vsub.f32 %v310, %v914
        %v916 = vand.u32 %v915, 4294901760
        %v917 = vsub.f32 %v915, %v916
        %v918 = vand.u32 %v917, 4294901760
        %919 = vmatpush1.msra.mxu0 %v918
        %920 = vmatprep.subr.mxu0 0.0
        %v921 = vand.u32 %v824, 4294901760
        %v922 = vsub.f32 %v824, %v921
        %v923 = vand.u32 %v922, 4294901760
        %v924 = vsub.f32 %v922, %v923
        %v925 = vand.u32 %v924, 4294901760
        %926 = vmatpush1.msra.mxu0 %v925
        %927 = vmatprep.subr.mxu0 0.0
        %928 = vmatpush1.msra.mxu0 0.0
        %929 = vmatprep.subr.mxu0 0.0
        %930 = vmatpush1.msra.mxu0 0.0
        %931 = vmatprep.subr.mxu0 0.0
        %932 = vmatpush1.msra.mxu0 0.0
        %933 = vmatprep.subr.mxu0 0.0
        %934 = vmatpush1.msra.mxu0 0.0
        %935 = vmatprep.subr.mxu0 0.0
        %936 = vmatpush1.msra.mxu0 0.0
        %937 = vmatprep.subr.mxu0 0.0
        %938 = vmatpush1.msra.mxu0 0.0
        %939 = vmatprep.subr.mxu0 0.0
        %940 = vmatpush1.msra.mxu0 0.0
        %941 = vmatprep.subr.mxu0 0.0
        %942 = vmatpush1.msra.mxu0 0.0
        %943 = vmatprep.subr.mxu0 0.0
        %944 = vmatpush1.msra.mxu0 0.0
        %945 = vmatprep.subr.mxu0 0.0
        %946 = vmatpush1.msra.mxu0 0.0
        %947 = vmatprep.subr.mxu0 0.0
        %948 = vmatpush1.msra.mxu0 0.0
        %949 = vmatprep.subr.mxu0 0.0
        %950 = vmatpush1.msra.mxu0 0.0
        %951 = vmatprep.subr.mxu0 0.0
        %952 = vmatpush1.msra.mxu0 0.0
        %953 = vmatprep.subr.mxu0 0.0
        %954 = vmatpush1.msra.mxu0 0.0
        %955 = vmatprep.subr.mxu0 0.0
        %956 = vmatpush1.msra.mxu0 0.0
        %957 = vmatprep.subr.mxu0 0.0
        %958 = vmatpush1.msra.mxu0 0.0
        %959 = vmatprep.subr.mxu0 0.0
        %960 = vmatpush1.msra.mxu0 0.0
        %961 = vmatprep.subr.mxu0 0.0
        %962 = vmatpush1.msra.mxu0 0.0
        %963 = vmatprep.subr.mxu0 0.0
        %964 = vmatpush1.msra.mxu0 0.0
        %965 = vmatprep.subr.mxu0 0.0
        %966 = vmatpush1.msra.mxu0 0.0
        %967 = vmatprep.subr.mxu0 0.0
        %968 = vmatpush1.msra.mxu0 0.0
        %969 = vmatprep.subr.mxu0 0.0
        %970 = vmatpush1.msra.mxu0 0.0
        %971 = vmatprep.subr.mxu0 0.0
        %972 = vmatpush1.msra.mxu0 0.0
        %973 = vmatprep.subr.mxu0 0.0
        %974 = vmatpush1.msra.mxu0 0.0
        %975 = vmatprep.subr.mxu0 0.0
        %976 = vmatpush1.msra.mxu0 0.0
        %977 = vmatprep.subr.mxu0 0.0
        %978 = vmatpush1.msra.mxu0 0.0
        %979 = vmatprep.subr.mxu0 0.0
        %980 = vmatpush1.msra.mxu0 0.0
        %981 = vmatprep.subr.mxu0 0.0
        %982 = vmatpush1.msra.mxu0 0.0
        %983 = vmatprep.subr.mxu0 0.0
        %984 = vmatpush1.msra.mxu0 0.0
        %985 = vmatprep.subr.mxu0 0.0
        %986 = vmatpush1.msra.mxu0 0.0
        %987 = vmatprep.mubr.f32.mxu0 0.0
        %v988 = vand.u32 %v817, 4294901760
        %989 = vmatmul.mubr.f32.gmra.mrb[0].mxu0 %v988
        %v990 = vpop.f32.mrb[0].mxu0
        %v991 = vadd.f32 %v900, %v990
        %v992 = vpop.f32.mrb[0].mxu0
        %993 = vmatprep.mubr.f32.mxu0 0.0
        %v994 = vand.u32 %v820, 4294901760
        %995 = vmatmul.mubr.f32.gmra.mrb[0].mxu0 %v994
        %v996 = vpop.f32.mrb[0].mxu0
        %v997 = vadd.f32 %v910, %v996
        %v998 = vpop.f32.mrb[0].mxu0
        %999 = vdwg.mxu0
        %1000 = vmatprep.subr.mxu0 0.0
        %v1001 = vand.u32 %v310, 4294901760
        %v1002 = vsub.f32 %v310, %v1001
        %1003 = vmatpush1.msra.mxu0 %v1002
        %1004 = vmatprep.subr.mxu0 0.0
        %v1005 = vand.u32 %v824, 4294901760
        %v1006 = vsub.f32 %v824, %v1005
        %1007 = vmatpush1.msra.mxu0 %v1006
        %1008 = vmatprep.subr.mxu0 0.0
        %1009 = vmatpush1.msra.mxu0 0.0
        %1010 = vmatprep.subr.mxu0 0.0
        %1011 = vmatpush1.msra.mxu0 0.0
        %1012 = vmatprep.subr.mxu0 0.0
        %1013 = vmatpush1.msra.mxu0 0.0
        %1014 = vmatprep.subr.mxu0 0.0
        %1015 = vmatpush1.msra.mxu0 0.0
        %1016 = vmatprep.subr.mxu0 0.0
        %1017 = vmatpush1.msra.mxu0 0.0
        %1018 = vmatprep.subr.mxu0 0.0
        %1019 = vmatpush1.msra.mxu0 0.0
        %1020 = vmatprep.subr.mxu0 0.0
        %1021 = vmatpush1.msra.mxu0 0.0
        %1022 = vmatprep.subr.mxu0 0.0
        %1023 = vmatpush1.msra.mxu0 0.0
        %1024 = vmatprep.subr.mxu0 0.0
        %1025 = vmatpush1.msra.mxu0 0.0
        %1026 = vmatprep.subr.mxu0 0.0
        %1027 = vmatpush1.msra.mxu0 0.0
        %1028 = vmatprep.subr.mxu0 0.0
        %1029 = vmatpush1.msra.mxu0 0.0
        %1030 = vmatprep.subr.mxu0 0.0
        %1031 = vmatpush1.msra.mxu0 0.0
        %1032 = vmatprep.subr.mxu0 0.0
        %1033 = vmatpush1.msra.mxu0 0.0
        %1034 = vmatprep.subr.mxu0 0.0
        %1035 = vmatpush1.msra.mxu0 0.0
        %1036 = vmatprep.subr.mxu0 0.0
        %1037 = vmatpush1.msra.mxu0 0.0
        %1038 = vmatprep.subr.mxu0 0.0
        %1039 = vmatpush1.msra.mxu0 0.0
        %1040 = vmatprep.subr.mxu0 0.0
        %1041 = vmatpush1.msra.mxu0 0.0
        %1042 = vmatprep.subr.mxu0 0.0
        %1043 = vmatpush1.msra.mxu0 0.0
        %1044 = vmatprep.subr.mxu0 0.0
        %1045 = vmatpush1.msra.mxu0 0.0
        %1046 = vmatprep.subr.mxu0 0.0
        %1047 = vmatpush1.msra.mxu0 0.0
        %1048 = vmatprep.subr.mxu0 0.0
        %1049 = vmatpush1.msra.mxu0 0.0
        %1050 = vmatprep.subr.mxu0 0.0
        %1051 = vmatpush1.msra.mxu0 0.0
        %1052 = vmatprep.subr.mxu0 0.0
        %1053 = vmatpush1.msra.mxu0 0.0
        %1054 = vmatprep.subr.mxu0 0.0
        %1055 = vmatpush1.msra.mxu0 0.0
        %1056 = vmatprep.subr.mxu0 0.0
        %1057 = vmatpush1.msra.mxu0 0.0
        %1058 = vmatprep.subr.mxu0 0.0
        %1059 = vmatpush1.msra.mxu0 0.0
        %1060 = vmatprep.subr.mxu0 0.0
        %1061 = vmatpush1.msra.mxu0 0.0
        %1062 = vmatprep.subr.mxu0 0.0
        %1063 = vmatpush1.msra.mxu0 0.0
        %1064 = vmatprep.subr.mxu0 0.0
        %1065 = vmatpush1.msra.mxu0 0.0
        %1066 = vmatprep.subr.mxu0 0.0
        %1067 = vmatpush1.msra.mxu0 0.0
        %1068 = vmatprep.mubr.f32.mxu0 0.0
        %v1069 = vand.u32 %v817, 4294901760
        %v1070 = vsub.f32 %v817, %v1069
        %1071 = vmatmul.mubr.f32.gmra.mrb[0].mxu0 %v1070
        %v1072 = vpop.f32.mrb[0].mxu0
        %v1073 = vadd.f32 %v991, %v1072
        %v1074 = vpop.f32.mrb[0].mxu0
        %1075 = vmatprep.mubr.f32.mxu0 0.0
        %v1076 = vand.u32 %v820, 4294901760
        %v1077 = vsub.f32 %v820, %v1076
        %1078 = vmatmul.mubr.f32.gmra.mrb[0].mxu0 %v1077
        %v1079 = vpop.f32.mrb[0].mxu0
        %v1080 = vadd.f32 %v997, %v1079
        %v1081 = vpop.f32.mrb[0].mxu0
        %1082 = vdwg.mxu0
        %1083 = vmatprep.subr.mxu0 0.0
        %v1084 = vand.u32 %v310, 4294901760
        %1085 = vmatpush1.msra.mxu0 %v1084
        %1086 = vmatprep.subr.mxu0 0.0
        %v1087 = vand.u32 %v824, 4294901760
        %1088 = vmatpush1.msra.mxu0 %v1087
        %1089 = vmatprep.subr.mxu0 0.0
        %1090 = vmatpush1.msra.mxu0 0.0
        %1091 = vmatprep.subr.mxu0 0.0
        %1092 = vmatpush1.msra.mxu0 0.0
        %1093 = vmatprep.subr.mxu0 0.0
        %1094 = vmatpush1.msra.mxu0 0.0
        %1095 = vmatprep.subr.mxu0 0.0
        %1096 = vmatpush1.msra.mxu0 0.0
        %1097 = vmatprep.subr.mxu0 0.0
        %1098 = vmatpush1.msra.mxu0 0.0
        %1099 = vmatprep.subr.mxu0 0.0
        %1100 = vmatpush1.msra.mxu0 0.0
        %1101 = vmatprep.subr.mxu0 0.0
        %1102 = vmatpush1.msra.mxu0 0.0
        %1103 = vmatprep.subr.mxu0 0.0
        %1104 = vmatpush1.msra.mxu0 0.0
        %1105 = vmatprep.subr.mxu0 0.0
        %1106 = vmatpush1.msra.mxu0 0.0
        %1107 = vmatprep.subr.mxu0 0.0
        %1108 = vmatpush1.msra.mxu0 0.0
        %1109 = vmatprep.subr.mxu0 0.0
        %1110 = vmatpush1.msra.mxu0 0.0
        %1111 = vmatprep.subr.mxu0 0.0
        %1112 = vmatpush1.msra.mxu0 0.0
        %1113 = vmatprep.subr.mxu0 0.0
        %1114 = vmatpush1.msra.mxu0 0.0
        %1115 = vmatprep.subr.mxu0 0.0
        %1116 = vmatpush1.msra.mxu0 0.0
        %1117 = vmatprep.subr.mxu0 0.0
        %1118 = vmatpush1.msra.mxu0 0.0
        %1119 = vmatprep.subr.mxu0 0.0
        %1120 = vmatpush1.msra.mxu0 0.0
        %1121 = vmatprep.subr.mxu0 0.0
        %1122 = vmatpush1.msra.mxu0 0.0
        %1123 = vmatprep.subr.mxu0 0.0
        %1124 = vmatpush1.msra.mxu0 0.0
        %1125 = vmatprep.subr.mxu0 0.0
        %1126 = vmatpush1.msra.mxu0 0.0
        %1127 = vmatprep.subr.mxu0 0.0
        %1128 = vmatpush1.msra.mxu0 0.0
        %1129 = vmatprep.subr.mxu0 0.0
        %1130 = vmatpush1.msra.mxu0 0.0
        %1131 = vmatprep.subr.mxu0 0.0
        %1132 = vmatpush1.msra.mxu0 0.0
        %1133 = vmatprep.subr.mxu0 0.0
        %1134 = vmatpush1.msra.mxu0 0.0
        %1135 = vmatprep.subr.mxu0 0.0
        %1136 = vmatpush1.msra.mxu0 0.0
        %1137 = vmatprep.subr.mxu0 0.0
        %1138 = vmatpush1.msra.mxu0 0.0
        %1139 = vmatprep.subr.mxu0 0.0
        %1140 = vmatpush1.msra.mxu0 0.0
        %1141 = vmatprep.subr.mxu0 0.0
        %1142 = vmatpush1.msra.mxu0 0.0
        %1143 = vmatprep.subr.mxu0 0.0
        %1144 = vmatpush1.msra.mxu0 0.0
        %1145 = vmatprep.subr.mxu0 0.0
        %1146 = vmatpush1.msra.mxu0 0.0
        %1147 = vmatprep.subr.mxu0 0.0
        %1148 = vmatpush1.msra.mxu0 0.0
        %1149 = vmatprep.mubr.f32.mxu0 0.0
        %v1150 = vand.u32 %v817, 4294901760
        %v1151 = vsub.f32 %v817, %v1150
        %v1152 = vand.u32 %v1151, 4294901760
        %1153 = vmatmul.mubr.f32.gmra.mrb[0].mxu0 %v1152
        %v1154 = vpop.f32.mrb[0].mxu0
        %v1155 = vadd.f32 %v1073, %v1154
        %v1156 = vpop.f32.mrb[0].mxu0
        %1157 = vmatprep.mubr.f32.mxu0 0.0
        %v1158 = vand.u32 %v820, 4294901760
        %v1159 = vsub.f32 %v820, %v1158
        %v1160 = vand.u32 %v1159, 4294901760
        %1161 = vmatmul.mubr.f32.gmra.mrb[0].mxu0 %v1160
        %v1162 = vpop.f32.mrb[0].mxu0
        %v1163 = vadd.f32 %v1080, %v1162
        %v1164 = vpop.f32.mrb[0].mxu0
        %1165 = vdwg.mxu0
        %1166 = vmatprep.subr.mxu0 0.0
        %v1167 = vand.u32 %v310, 4294901760
        %v1168 = vsub.f32 %v310, %v1167
        %v1169 = vand.u32 %v1168, 4294901760
        %1170 = vmatpush1.msra.mxu0 %v1169
        %1171 = vmatprep.subr.mxu0 0.0
        %v1172 = vand.u32 %v824, 4294901760
        %v1173 = vsub.f32 %v824, %v1172
        %v1174 = vand.u32 %v1173, 4294901760
        %1175 = vmatpush1.msra.mxu0 %v1174
        %1176 = vmatprep.subr.mxu0 0.0
        %1177 = vmatpush1.msra.mxu0 0.0
        %1178 = vmatprep.subr.mxu0 0.0
        %1179 = vmatpush1.msra.mxu0 0.0
        %1180 = vmatprep.subr.mxu0 0.0
        %1181 = vmatpush1.msra.mxu0 0.0
        %1182 = vmatprep.subr.mxu0 0.0
        %1183 = vmatpush1.msra.mxu0 0.0
        %1184 = vmatprep.subr.mxu0 0.0
        %1185 = vmatpush1.msra.mxu0 0.0
        %1186 = vmatprep.subr.mxu0 0.0
        %1187 = vmatpush1.msra.mxu0 0.0
        %1188 = vmatprep.subr.mxu0 0.0
        %1189 = vmatpush1.msra.mxu0 0.0
        %1190 = vmatprep.subr.mxu0 0.0
        %1191 = vmatpush1.msra.mxu0 0.0
        %1192 = vmatprep.subr.mxu0 0.0
        %1193 = vmatpush1.msra.mxu0 0.0
        %1194 = vmatprep.subr.mxu0 0.0
        %1195 = vmatpush1.msra.mxu0 0.0
        %1196 = vmatprep.subr.mxu0 0.0
        %1197 = vmatpush1.msra.mxu0 0.0
        %1198 = vmatprep.subr.mxu0 0.0
        %1199 = vmatpush1.msra.mxu0 0.0
        %1200 = vmatprep.subr.mxu0 0.0
        %1201 = vmatpush1.msra.mxu0 0.0
        %1202 = vmatprep.subr.mxu0 0.0
        %1203 = vmatpush1.msra.mxu0 0.0
        %1204 = vmatprep.subr.mxu0 0.0
        %1205 = vmatpush1.msra.mxu0 0.0
        %1206 = vmatprep.subr.mxu0 0.0
        %1207 = vmatpush1.msra.mxu0 0.0
        %1208 = vmatprep.subr.mxu0 0.0
        %1209 = vmatpush1.msra.mxu0 0.0
        %1210 = vmatprep.subr.mxu0 0.0
        %1211 = vmatpush1.msra.mxu0 0.0
        %1212 = vmatprep.subr.mxu0 0.0
        %1213 = vmatpush1.msra.mxu0 0.0
        %1214 = vmatprep.subr.mxu0 0.0
        %1215 = vmatpush1.msra.mxu0 0.0
        %1216 = vmatprep.subr.mxu0 0.0
        %1217 = vmatpush1.msra.mxu0 0.0
        %1218 = vmatprep.subr.mxu0 0.0
        %1219 = vmatpush1.msra.mxu0 0.0
        %1220 = vmatprep.subr.mxu0 0.0
        %1221 = vmatpush1.msra.mxu0 0.0
        %1222 = vmatprep.subr.mxu0 0.0
        %1223 = vmatpush1.msra.mxu0 0.0
        %1224 = vmatprep.subr.mxu0 0.0
        %1225 = vmatpush1.msra.mxu0 0.0
        %1226 = vmatprep.subr.mxu0 0.0
        %1227 = vmatpush1.msra.mxu0 0.0
        %1228 = vmatprep.subr.mxu0 0.0
        %1229 = vmatpush1.msra.mxu0 0.0
        %1230 = vmatprep.subr.mxu0 0.0
        %1231 = vmatpush1.msra.mxu0 0.0
        %1232 = vmatprep.subr.mxu0 0.0
        %1233 = vmatpush1.msra.mxu0 0.0
        %1234 = vmatprep.subr.mxu0 0.0
        %1235 = vmatpush1.msra.mxu0 0.0
        %1236 = vmatprep.mubr.f32.mxu0 0.0
        %v1237 = vand.u32 %v817, 4294901760
        %1238 = vmatmul.mubr.f32.gmra.mrb[0].mxu0 %v1237
        %v1239 = vpop.f32.mrb[0].mxu0
        %v1240 = vadd.f32 %v1155, %v1239
        %v1241 = vpop.f32.mrb[0].mxu0
        %1242 = vmatprep.mubr.f32.mxu0 0.0
        %v1243 = vand.u32 %v820, 4294901760
        %1244 = vmatmul.mubr.f32.gmra.mrb[0].mxu0 %v1243
        %v1245 = vpop.f32.mrb[0].mxu0
        %v1246 = vadd.f32 %v1163, %v1245
        %v1247 = vpop.f32.mrb[0].mxu0
        %1248 = vdwg.mxu0
        %1249 = vmatprep.subr.mxu0 0.0
        %v1250 = vand.u32 %v310, 4294901760
        %1251 = vmatpush1.msra.mxu0 %v1250
        %1252 = vmatprep.subr.mxu0 0.0
        %v1253 = vand.u32 %v824, 4294901760
        %1254 = vmatpush1.msra.mxu0 %v1253
        %1255 = vmatprep.subr.mxu0 0.0
        %1256 = vmatpush1.msra.mxu0 0.0
        %1257 = vmatprep.subr.mxu0 0.0
        %1258 = vmatpush1.msra.mxu0 0.0
        %1259 = vmatprep.subr.mxu0 0.0
        %1260 = vmatpush1.msra.mxu0 0.0
        %1261 = vmatprep.subr.mxu0 0.0
        %1262 = vmatpush1.msra.mxu0 0.0
        %1263 = vmatprep.subr.mxu0 0.0
        %1264 = vmatpush1.msra.mxu0 0.0
        %1265 = vmatprep.subr.mxu0 0.0
        %1266 = vmatpush1.msra.mxu0 0.0
        %1267 = vmatprep.subr.mxu0 0.0
        %1268 = vmatpush1.msra.mxu0 0.0
        %1269 = vmatprep.subr.mxu0 0.0
        %1270 = vmatpush1.msra.mxu0 0.0
        %1271 = vmatprep.subr.mxu0 0.0
        %1272 = vmatpush1.msra.mxu0 0.0
        %1273 = vmatprep.subr.mxu0 0.0
        %1274 = vmatpush1.msra.mxu0 0.0
        %1275 = vmatprep.subr.mxu0 0.0
        %1276 = vmatpush1.msra.mxu0 0.0
        %1277 = vmatprep.subr.mxu0 0.0
        %1278 = vmatpush1.msra.mxu0 0.0
        %1279 = vmatprep.subr.mxu0 0.0
        %1280 = vmatpush1.msra.mxu0 0.0
        %1281 = vmatprep.subr.mxu0 0.0
        %1282 = vmatpush1.msra.mxu0 0.0
        %1283 = vmatprep.subr.mxu0 0.0
        %1284 = vmatpush1.msra.mxu0 0.0
        %1285 = vmatprep.subr.mxu0 0.0
        %1286 = vmatpush1.msra.mxu0 0.0
        %1287 = vmatprep.subr.mxu0 0.0
        %1288 = vmatpush1.msra.mxu0 0.0
        %1289 = vmatprep.subr.mxu0 0.0
        %1290 = vmatpush1.msra.mxu0 0.0
        %1291 = vmatprep.subr.mxu0 0.0
        %1292 = vmatpush1.msra.mxu0 0.0
        %1293 = vmatprep.subr.mxu0 0.0
        %1294 = vmatpush1.msra.mxu0 0.0
        %1295 = vmatprep.subr.mxu0 0.0
        %1296 = vmatpush1.msra.mxu0 0.0
        %1297 = vmatprep.subr.mxu0 0.0
        %1298 = vmatpush1.msra.mxu0 0.0
        %1299 = vmatprep.subr.mxu0 0.0
        %1300 = vmatpush1.msra.mxu0 0.0
        %1301 = vmatprep.subr.mxu0 0.0
        %1302 = vmatpush1.msra.mxu0 0.0
        %1303 = vmatprep.subr.mxu0 0.0
        %1304 = vmatpush1.msra.mxu0 0.0
        %1305 = vmatprep.subr.mxu0 0.0
        %1306 = vmatpush1.msra.mxu0 0.0
        %1307 = vmatprep.subr.mxu0 0.0
        %1308 = vmatpush1.msra.mxu0 0.0
        %1309 = vmatprep.subr.mxu0 0.0
        %1310 = vmatpush1.msra.mxu0 0.0
        %1311 = vmatprep.subr.mxu0 0.0
        %1312 = vmatpush1.msra.mxu0 0.0
        %1313 = vmatprep.subr.mxu0 0.0
        %1314 = vmatpush1.msra.mxu0 0.0
        %1315 = vmatprep.mubr.f32.mxu0 0.0
        %v1316 = vand.u32 %v817, 4294901760
        %1317 = vmatmul.mubr.f32.gmra.mrb[0].mxu0 %v1316
        %v1318 = vpop.f32.mrb[0].mxu0
        %v1319 = vadd.f32 %v1240, %v1318
        %v1320 = vpop.f32.mrb[0].mxu0
        %1321 = vmatprep.mubr.f32.mxu0 0.0
        %v1322 = vand.u32 %v820, 4294901760
        %1323 = vmatmul.mubr.f32.gmra.mrb[0].mxu0 %v1322
        %v1324 = vpop.f32.mrb[0].mxu0
        %v1325 = vadd.f32 %v1246, %v1324
        %v1326 = vpop.f32.mrb[0].mxu0
        %1327 = vdwg.mxu0
        %v1328 = vmin.f32 %v1319, 1.0
        %v1329 = vmin.f32 %v1325, 1.0
        %v1330 = vadd.f32 %v1328, 1e-05
        %v1331 = vadd.f32 %v1329, 1e-05
        %vm1332 = vcmask 392192
        %1333 = vst.msk [vmem:[%s262] sm:$0xff] %vm1332, %v1330
        %1334 = vst.msk [vmem:[%s262 + $0x8] sm:$0xff] %vm1332, %v1331
        %1335 = vst.msk [vmem:[%s269] sm:$0xff] %vm1332, %v1319
        %1336 = vst.msk [vmem:[%s269 + $0x8] sm:$0xff] %vm1332, %v1325
        %s1337 = sand.u32 %s125, 1
        %s1338 = scalar_lea.sflag [#allocation3], %s1337
        %s1339 = sand.u32 %s125, 1
        %s1340 = smul.addr %s1339, 16
        %s1341 = scalar_lea.vmem [#allocation2], %s1340
        %s1342 = sand.u32 %s151, 1
        %s1343 = scalar_lea.sflag [#allocation5], %s1342
        %s1344 = sand.u32 %s151, 1
        %s1345 = smul.addr %s1344, 16
        %s1346 = scalar_lea.vmem [#allocation4], %s1345
        // Predicated region
        $region37: #{tpu_custom_call.1} parent=35 // pred_check
          %p1347 = pneg %p135
        $region38: #{tpu_custom_call.1} parent=35 // pred_check_branch
          %1349 = sbr.rel (%p1347) target = $region40
        $region39: #{tpu_custom_call.1} parent=35 // pred_region
          %s1350 = smul.u32 2, %s23
          %s1351 = ssub.s32 3, %s1350
          %p1352 = scmp.lt.s32.totalorder %s1351, 2
          %s1353 = scalar_select %p1352, %s1351, 2
          %s1354 = smul.u32 128, %s1353
          %s1356 = ssub.s32 256, %s1354
          %1357 = vsyncadd %s1338, %s1356
          %p1358 = scmp.ne.s32.totalorder 0, %s1354
          %s1359 = smul.addr %s1350, 128
          %s1360 = scalar_lea.hbm %s4, %s1359
          %s1361 = smul.u32 8, %s1353
          %s1362 = sshll.u32 %s1341, 4
          %s1363 = int_to_ptr.vmem [resolvable:$true] %s1362
          %s1364 = sshll.u32 %s1361, 4
          %1368 = dma.vmem_to_hbm [thread:$0]  (%p1358), %s1363, %s1364, %s1360, %s1338, 128, 128, 8
        $region40: #{tpu_custom_call.1} parent=35 // pred_fallthru
          _
        // Predicated region
        $region41: #{tpu_custom_call.1} parent=35 // pred_check
          %p1369 = pneg %p161
        $region42: #{tpu_custom_call.1} parent=35 // pred_check_branch
          %1371 = sbr.rel (%p1369) target = $region44
        $region43: #{tpu_custom_call.1} parent=35 // pred_region
          %s1372 = smul.u32 2, %s23
          %s1373 = ssub.s32 3, %s1372
          %p1374 = scmp.lt.s32.totalorder %s1373, 2
          %s1375 = scalar_select %p1374, %s1373, 2
          %s1376 = smul.u32 128, %s1375
          %s1378 = ssub.s32 256, %s1376
          %1379 = vsyncadd %s1343, %s1378
          %p1380 = scmp.ne.s32.totalorder 0, %s1376
          %s1381 = smul.addr %s1372, 128
          %s1382 = scalar_lea.hbm %s5, %s1381
          %s1383 = smul.u32 8, %s1375
          %s1384 = sshll.u32 %s1346, 4
          %s1385 = int_to_ptr.vmem [resolvable:$true] %s1384
          %s1386 = sshll.u32 %s1383, 4
          %1390 = dma.vmem_to_hbm [thread:$0]  (%p1380), %s1385, %s1386, %s1382, %s1343, 128, 128, 8
        $region44: #{tpu_custom_call.1} parent=35 // pred_fallthru
          _
      $region36: #{tpu_custom_call.1} parent=5 // pred_fallthru
        _
      %p1391 = scmp.le.s32.totalorder 2, %s18
      // Predicated region
      $region45: #{tpu_custom_call.1} parent=5 // pred_check
        %p1392 = pneg %p1391
      $region46: #{tpu_custom_call.1} parent=5 // pred_check_branch
        %1394 = sbr.rel (%p1392) target = $region48
      $region47: #{tpu_custom_call.1} parent=5 // pred_region
        %s1395 = ssub.s32 %s18, 2
        // Predicated region
        $region49: #{tpu_custom_call.1} parent=47 // pred_check
          %p1396 = pneg %p141
        $region50: #{tpu_custom_call.1} parent=47 // pred_check_branch
          %1398 = sbr.rel (%p1396) target = $region52
        $region51: #{tpu_custom_call.1} parent=47 // pred_region
          %s1399 = sand.u32 %s126, 1
          %s1400 = scalar_lea.sflag [#allocation3], %s1399
          %s1401 = sand.u32 %s126, 1
          %s1402 = smul.addr %s1401, 16
          %s1403 = scalar_lea.vmem [#allocation2], %s1402
          %1404 = dma.done %s1400, 256
        $region52: #{tpu_custom_call.1} parent=47 // pred_fallthru
          _
        // Predicated region
        $region53: #{tpu_custom_call.1} parent=47 // pred_check
          %p1405 = pneg %p167
        $region54: #{tpu_custom_call.1} parent=47 // pred_check_branch
          %1407 = sbr.rel (%p1405) target = $region56
        $region55: #{tpu_custom_call.1} parent=47 // pred_region
          %s1408 = sand.u32 %s152, 1
          %s1409 = scalar_lea.sflag [#allocation5], %s1408
          %s1410 = sand.u32 %s152, 1
          %s1411 = smul.addr %s1410, 16
          %s1412 = scalar_lea.vmem [#allocation4], %s1411
          %1413 = dma.done %s1409, 256
        $region56: #{tpu_custom_call.1} parent=47 // pred_fallthru
          _
      $region48: #{tpu_custom_call.1} parent=5 // pred_fallthru
        _
    $region6: #{tpu_custom_call.1} parent=1 // loop_footer
      %s22 = sadd.s32 1, %s18
    $region7: #{tpu_custom_call.1} parent=1 // loop_footer_branch
      %17 = sbr.rel target = $region3
    $region8: #{tpu_custom_call.1} parent=1 // loop_exit
      _
    %1414 = vsyncpa [#allocation3], 1
    %s1415 = scalar_lea.sflag [#allocation3], 1
    %1416 = vsyncpa %s1415, 1
    %1417 = vsyncpa [#allocation5], 1
    %s1418 = scalar_lea.sflag [#allocation5], 1
    %1419 = vsyncpa %s1418, 1

</llo_original>
